<compile_context>
chip_gen: v7x
topology: tpu7x:2x2x1
jax: 0.10.0
libtpu: 0.0.40
codegen_flags: <defaults>
</compile_context>

<pallas_src>
import jax
import jax.numpy as jnp
from jax.experimental import pallas as pl
from jax.experimental.pallas import tpu as pltpu


def vae_kernel(
    x_ref, eps_ref,
    we_ref, be_ref,
    wh_ref, bh_ref,
    wd1_ref, bd1_ref,
    wd2_ref, bd2_ref,
    y_ref, ml_ref,
):
    L = eps_ref.shape[-1]

    x = x_ref[...]                                        # (TB, D) bf16

    # encoder: Linear(D, H) + ReLU    (bf16 MXU inputs, f32 accumulate)
    h = jnp.dot(x, we_ref[...], preferred_element_type=jnp.float32) + be_ref[...]
    h = jnp.maximum(h, 0.0)

    # fused mu || logsigma head: one lane-dense (H, 2L) matmul
    ml = jnp.dot(h.astype(jnp.bfloat16), wh_ref[...],
                 preferred_element_type=jnp.float32) + bh_ref[...]
    mu = ml[:, :L]
    logsigma = ml[:, L:]

    # reparameterize in f32: z = mu + eps * exp(logsigma / 2)   (EUP exp)
    z = mu + eps_ref[...] * jnp.exp(logsigma * 0.5)

    # decoder: Linear(L, H) + ReLU + Linear(H, D)
    h2 = jnp.dot(z.astype(jnp.bfloat16), wd1_ref[...],
                 preferred_element_type=jnp.float32) + bd1_ref[...]
    h2 = jnp.maximum(h2, 0.0)
    y = jnp.dot(h2.astype(jnp.bfloat16), wd2_ref[...],
                preferred_element_type=jnp.float32) + bd2_ref[...]

    y_ref[...] = y.astype(y_ref.dtype)
    ml_ref[...] = ml.astype(ml_ref.dtype)                 # lane-dense (TB, 2L)


def _round_up(a, m):
    return (a + m - 1) // m * m


def vae_forward(x_nchw, eps, params, *, tile_rows=256):
    """x_nchw: (B, C, H, W) float32.  eps: (B, latent) standard-normal noise.

    Returns (y, mu, logsigma) matching Vae.forward (with eps supplied)."""
    B = x_nchw.shape[0]
    D, Hd = params["w_enc"].shape
    L = eps.shape[1]

    # glue: x.view(-1, image_size); cast to bf16 for the MXU input
    x = x_nchw.reshape(B, D).astype(jnp.bfloat16)
    eps = eps.astype(jnp.float32)

    # pad batch to a full sublane / tile multiple
    TB = min(tile_rows, _round_up(B, 8))
    Bp = _round_up(B, TB)
    if Bp != B:
        x = jnp.pad(x, ((0, Bp - B), (0, 0)))
        eps = jnp.pad(eps, ((0, Bp - B), (0, 0)))

    grid = (Bp // TB,)

    def row_spec(nrows, ncols):
        return pl.BlockSpec((nrows, ncols), lambda i: (i, 0))

    def const_spec(shape):
        # closes over `shape` (function parameter) -> no late-binding bug
        return pl.BlockSpec(shape, lambda i: (0, 0))

    args = (
        x, eps,
        params["w_enc"], params["b_enc"],
        params["w_head"], params["b_head"],
        params["w_dec1"], params["b_dec1"],
        params["w_dec2"], params["b_dec2"],
    )

    in_specs = [row_spec(TB, D), row_spec(TB, L)] + \
               [const_spec(a.shape) for a in args[2:]]

    out_shapes = (
        jax.ShapeDtypeStruct((Bp, D), jnp.float32),       # y
        jax.ShapeDtypeStruct((Bp, 2 * L), jnp.float32),   # mu || logsigma
    )
    out_specs = [row_spec(TB, D), row_spec(TB, 2 * L)]

    flops = 2 * Bp * (D * Hd + Hd * 2 * L + L * Hd + Hd * D)
    bytes_in = sum(int(a.size) * int(a.dtype.itemsize) for a in args)
    bytes_out = Bp * D * 4 + Bp * 2 * L * 4
    cost = pl.CostEstimate(flops=int(flops),
                           transcendentals=int(Bp * L),
                           bytes_accessed=int(bytes_in + bytes_out))

    y, ml = pl.pallas_call(
        vae_kernel,
        out_shape=out_shapes,
        grid_spec=pltpu.PrefetchScalarGridSpec(
            num_scalar_prefetch=0,
            grid=grid,
            in_specs=in_specs,
            out_specs=out_specs,
        ),
        compiler_params=pltpu.CompilerParams(
            dimension_semantics=("parallel",),            # megacore on v7x
            vmem_limit_bytes=32 * 1024 * 1024,            # safe on v5e/v6e/v7x
        ),
        cost_estimate=cost,
    )(*args)

    y = y[:B]
    mu = ml[:B, :L]
    logsigma = ml[:B, L:]
    return y, mu, logsigma


def init_params(key, image_size, hidden_dim, latent_dim):
    ks = jax.random.split(key, 10)

    def lin(kw, kb, fan_in, fan_out):
        bound = 1.0 / jnp.sqrt(fan_in)
        w = jax.random.uniform(kw, (fan_in, fan_out), jnp.float32, -bound, bound)
        b = jax.random.uniform(kb, (1, fan_out), jnp.float32, -bound, bound)
        return w, b

    w_enc, b_enc = lin(ks[0], ks[1], image_size, hidden_dim)
    w_mu, b_mu = lin(ks[2], ks[3], hidden_dim, latent_dim)
    w_sig, b_sig = lin(ks[4], ks[5], hidden_dim, latent_dim)
    w_dec1, b_dec1 = lin(ks[6], ks[7], latent_dim, hidden_dim)
    w_dec2, b_dec2 = lin(ks[8], ks[9], hidden_dim, image_size)

    # fuse mu / logsigma heads into one lane-dense (H, 2L) weight / (1, 2L) bias
    w_head = jnp.concatenate([w_mu, w_sig], axis=1)
    b_head = jnp.concatenate([b_mu, b_sig], axis=1)

    bf16 = jnp.bfloat16
    return dict(
        w_enc=w_enc.astype(bf16), b_enc=b_enc,
        w_head=w_head.astype(bf16), b_head=b_head,
        w_dec1=w_dec1.astype(bf16), b_dec1=b_dec1,
        w_dec2=w_dec2.astype(bf16), b_dec2=b_dec2,
    )


def vae_reference(x_nchw, eps, params):
    """Pure-JAX reference mirroring the kernel's dtype policy
    (bf16 matmul inputs, f32 accumulation, f32 elementwise)."""
    B = x_nchw.shape[0]
    D, _ = params["w_enc"].shape
    L = eps.shape[1]
    f32 = jnp.float32
    bf16 = jnp.bfloat16

    x = x_nchw.reshape(B, D).astype(bf16)
    h = jnp.maximum(jnp.dot(x, params["w_enc"], preferred_element_type=f32)
                    + params["b_enc"], 0.0)
    ml = jnp.dot(h.astype(bf16), params["w_head"],
                 preferred_element_type=f32) + params["b_head"]
    mu, logsigma = ml[:, :L], ml[:, L:]
    z = mu + eps * jnp.exp(logsigma * 0.5)
    h2 = jnp.maximum(jnp.dot(z.astype(bf16), params["w_dec1"],
                             preferred_element_type=f32) + params["b_dec1"], 0.0)
    y = jnp.dot(h2.astype(bf16), params["w_dec2"],
                preferred_element_type=f32) + params["b_dec2"]
    return y, mu, logsigma


if __name__ == "__main__":
    # Small shapes consistent with the module: image 1x16x16 -> image_size=256.
    B, C, H, W = 2, 1, 16, 16
    image_size = C * H * W        # 256
    hidden_dim = 128
    latent_dim = 64

    key = jax.random.PRNGKey(0)
    k_x, k_eps, k_p = jax.random.split(key, 3)

    x = jax.random.normal(k_x, (B, C, H, W), jnp.float32)
    # the torch.normal(mean=0, std=1) noise of reparameterize(), passed explicitly
    eps = jax.random.normal(k_eps, (B, latent_dim), jnp.float32)

    params = init_params(k_p, image_size, hidden_dim, latent_dim)

    y, mu, logsigma = vae_forward(x, eps, params)
    jax.block_until_ready((y, mu, logsigma))

    # sanity check against a pure-JAX reference with identical dtype policy
    y_r, mu_r, ls_r = vae_reference(x, eps, params)
    assert y.shape == (B, image_size)
    assert mu.shape == (B, latent_dim) and logsigma.shape == (B, latent_dim)
    assert jnp.allclose(y, y_r, atol=2e-3, rtol=2e-3)
    assert jnp.allclose(mu, mu_r, atol=2e-3, rtol=2e-3)
    assert jnp.allclose(logsigma, ls_r, atol=2e-3, rtol=2e-3)

    print("KERNEL_OK")
</pallas_src>

<mosaic_0001>
module attributes {stable_mosaic.version = 11 : i64} {
  func.func @vae_kernel(%arg0: i32, %arg1: memref<8x256xbf16, #tpu.memory_space<vmem>>, %arg2: memref<8x64xf32, #tpu.memory_space<vmem>>, %arg3: memref<256x128xbf16, #tpu.memory_space<vmem>>, %arg4: memref<1x128xf32, #tpu.memory_space<vmem>>, %arg5: memref<128x128xbf16, #tpu.memory_space<vmem>>, %arg6: memref<1x128xf32, #tpu.memory_space<vmem>>, %arg7: memref<64x128xbf16, #tpu.memory_space<vmem>>, %arg8: memref<1x128xf32, #tpu.memory_space<vmem>>, %arg9: memref<128x256xbf16, #tpu.memory_space<vmem>>, %arg10: memref<1x256xf32, #tpu.memory_space<vmem>>, %arg11: memref<8x256xf32, #tpu.memory_space<vmem>>, %arg12: memref<8x128xf32, #tpu.memory_space<vmem>>) attributes {dimension_semantics = [#tpu.dimension_semantics<parallel>], iteration_bounds = array<i64: 1>, scalar_prefetch = 0 : i64, scratch_operands = 0 : i64, tpu.core_type = #tpu.core_type<tc>, window_params = [{transform_indices = @transform_0, window_bounds = array<i64: 8, 256>}, {transform_indices = @transform_1, window_bounds = array<i64: 8, 64>}, {pipeline_mode = #tpu.pipeline_mode<synchronous>, transform_indices = @transform_2, window_bounds = array<i64: 256, 128>}, {pipeline_mode = #tpu.pipeline_mode<synchronous>, transform_indices = @transform_3, window_bounds = array<i64: 1, 128>}, {pipeline_mode = #tpu.pipeline_mode<synchronous>, transform_indices = @transform_4, window_bounds = array<i64: 128, 128>}, {pipeline_mode = #tpu.pipeline_mode<synchronous>, transform_indices = @transform_5, window_bounds = array<i64: 1, 128>}, {pipeline_mode = #tpu.pipeline_mode<synchronous>, transform_indices = @transform_6, window_bounds = array<i64: 64, 128>}, {pipeline_mode = #tpu.pipeline_mode<synchronous>, transform_indices = @transform_7, window_bounds = array<i64: 1, 128>}, {pipeline_mode = #tpu.pipeline_mode<synchronous>, transform_indices = @transform_8, window_bounds = array<i64: 128, 256>}, {pipeline_mode = #tpu.pipeline_mode<synchronous>, transform_indices = @transform_9, window_bounds = array<i64: 1, 256>}, {transform_indices = @transform_10, window_bounds = array<i64: 8, 256>}, {transform_indices = @transform_11, window_bounds = array<i64: 8, 128>}]} {
    %c0 = arith.constant 0 : index
    %c0_0 = arith.constant 0 : index
    %0 = vector.load %arg1[%c0, %c0_0] : memref<8x256xbf16, #tpu.memory_space<vmem>>, vector<8x256xbf16>
    %c0_1 = arith.constant 0 : index
    %c0_2 = arith.constant 0 : index
    %1 = vector.load %arg3[%c0_1, %c0_2] : memref<256x128xbf16, #tpu.memory_space<vmem>>, vector<256x128xbf16>
    %cst = arith.constant dense<0.000000e+00> : vector<8x128xf32>
    %2 = tpu.matmul %0, %1, %cst {dimension_numbers = #tpu.dot_dimension_numbers<[1], [0], [0], [1], [0, 0, 1, 1], [], []>} : vector<8x256xbf16>, vector<256x128xbf16>, vector<8x128xf32> -> vector<8x128xf32>
    %c0_3 = arith.constant 0 : index
    %c0_4 = arith.constant 0 : index
    %3 = vector.load %arg4[%c0_3, %c0_4] : memref<1x128xf32, #tpu.memory_space<vmem>>, vector<1x128xf32>
    %4 = vector.broadcast %3 : vector<1x128xf32> to vector<8x128xf32>
    %5 = arith.addf %2, %4 : vector<8x128xf32>
    %cst_5 = arith.constant 0.000000e+00 : f32
    %6 = vector.broadcast %cst_5 : f32 to vector<8x128xf32>
    %7 = arith.maximumf %5, %6 : vector<8x128xf32>
    %8 = arith.truncf %7 : vector<8x128xf32> to vector<8x128xbf16>
    %c0_6 = arith.constant 0 : index
    %c0_7 = arith.constant 0 : index
    %9 = vector.load %arg5[%c0_6, %c0_7] : memref<128x128xbf16, #tpu.memory_space<vmem>>, vector<128x128xbf16>
    %cst_8 = arith.constant dense<0.000000e+00> : vector<8x128xf32>
    %10 = tpu.matmul %8, %9, %cst_8 {dimension_numbers = #tpu.dot_dimension_numbers<[1], [0], [0], [1], [0, 0, 1, 1], [], []>} : vector<8x128xbf16>, vector<128x128xbf16>, vector<8x128xf32> -> vector<8x128xf32>
    %c0_9 = arith.constant 0 : index
    %c0_10 = arith.constant 0 : index
    %11 = vector.load %arg6[%c0_9, %c0_10] : memref<1x128xf32, #tpu.memory_space<vmem>>, vector<1x128xf32>
    %12 = vector.broadcast %11 : vector<1x128xf32> to vector<8x128xf32>
    %13 = arith.addf %10, %12 : vector<8x128xf32>
    %14 = vector.extract_strided_slice %13 {offsets = [0, 0], sizes = [8, 64], strides = [1, 1]} : vector<8x128xf32> to vector<8x64xf32>
    %15 = vector.extract_strided_slice %13 {offsets = [0, 64], sizes = [8, 64], strides = [1, 1]} : vector<8x128xf32> to vector<8x64xf32>
    %c0_11 = arith.constant 0 : index
    %c0_12 = arith.constant 0 : index
    %16 = vector.load %arg2[%c0_11, %c0_12] : memref<8x64xf32, #tpu.memory_space<vmem>>, vector<8x64xf32>
    %cst_13 = arith.constant 5.000000e-01 : f32
    %17 = vector.broadcast %cst_13 : f32 to vector<8x64xf32>
    %18 = arith.mulf %15, %17 : vector<8x64xf32>
    %19 = math.exp %18 : vector<8x64xf32>
    %20 = arith.mulf %16, %19 : vector<8x64xf32>
    %21 = arith.addf %14, %20 : vector<8x64xf32>
    %22 = arith.truncf %21 : vector<8x64xf32> to vector<8x64xbf16>
    %c0_14 = arith.constant 0 : index
    %c0_15 = arith.constant 0 : index
    %23 = vector.load %arg7[%c0_14, %c0_15] : memref<64x128xbf16, #tpu.memory_space<vmem>>, vector<64x128xbf16>
    %cst_16 = arith.constant dense<0.000000e+00> : vector<8x128xf32>
    %24 = tpu.matmul %22, %23, %cst_16 {dimension_numbers = #tpu.dot_dimension_numbers<[1], [0], [0], [1], [0, 0, 1, 1], [], []>} : vector<8x64xbf16>, vector<64x128xbf16>, vector<8x128xf32> -> vector<8x128xf32>
    %c0_17 = arith.constant 0 : index
    %c0_18 = arith.constant 0 : index
    %25 = vector.load %arg8[%c0_17, %c0_18] : memref<1x128xf32, #tpu.memory_space<vmem>>, vector<1x128xf32>
    %26 = vector.broadcast %25 : vector<1x128xf32> to vector<8x128xf32>
    %27 = arith.addf %24, %26 : vector<8x128xf32>
    %cst_19 = arith.constant 0.000000e+00 : f32
    %28 = vector.broadcast %cst_19 : f32 to vector<8x128xf32>
    %29 = arith.maximumf %27, %28 : vector<8x128xf32>
    %30 = arith.truncf %29 : vector<8x128xf32> to vector<8x128xbf16>
    %c0_20 = arith.constant 0 : index
    %c0_21 = arith.constant 0 : index
    %31 = vector.load %arg9[%c0_20, %c0_21] : memref<128x256xbf16, #tpu.memory_space<vmem>>, vector<128x256xbf16>
    %cst_22 = arith.constant dense<0.000000e+00> : vector<8x256xf32>
    %32 = tpu.matmul %30, %31, %cst_22 {dimension_numbers = #tpu.dot_dimension_numbers<[1], [0], [0], [1], [0, 0, 1, 1], [], []>} : vector<8x128xbf16>, vector<128x256xbf16>, vector<8x256xf32> -> vector<8x256xf32>
    %c0_23 = arith.constant 0 : index
    %c0_24 = arith.constant 0 : index
    %33 = vector.load %arg10[%c0_23, %c0_24] : memref<1x256xf32, #tpu.memory_space<vmem>>, vector<1x256xf32>
    %34 = vector.broadcast %33 : vector<1x256xf32> to vector<8x256xf32>
    %35 = arith.addf %32, %34 : vector<8x256xf32>
    %c0_25 = arith.constant 0 : index
    %c0_26 = arith.constant 0 : index
    %36 = vector.load %arg11[%c0_25, %c0_26] : memref<8x256xf32, #tpu.memory_space<vmem>>, vector<8x256xf32>
    tpu.vector_store %arg11[%c0_25, %c0_26], %35 {strides = array<i32>} : memref<8x256xf32, #tpu.memory_space<vmem>>, vector<8x256xf32>,
    %c0_27 = arith.constant 0 : index
    %c0_28 = arith.constant 0 : index
    %37 = vector.load %arg12[%c0_27, %c0_28] : memref<8x128xf32, #tpu.memory_space<vmem>>, vector<8x128xf32>
    tpu.vector_store %arg12[%c0_27, %c0_28], %13 {strides = array<i32>} : memref<8x128xf32, #tpu.memory_space<vmem>>, vector<8x128xf32>,
    return
  }
  func.func @transform_0(%arg0: i32) -> (i32, i32) {
    %c0_i32 = arith.constant 0 : i32
    %c0_i32_0 = arith.constant 0 : i32
    return %arg0, %c0_i32 : i32, i32
  }
  func.func @transform_1(%arg0: i32) -> (i32, i32) {
    %c0_i32 = arith.constant 0 : i32
    %c0_i32_0 = arith.constant 0 : i32
    return %arg0, %c0_i32 : i32, i32
  }
  func.func @transform_2(%arg0: i32) -> (i32, i32) {
    %c0_i32 = arith.constant 0 : i32
    %c0_i32_0 = arith.constant 0 : i32
    %c0_i32_1 = arith.constant 0 : i32
    return %c0_i32, %c0_i32_0 : i32, i32
  }
  func.func @transform_3(%arg0: i32) -> (i32, i32) {
    %c0_i32 = arith.constant 0 : i32
    %c0_i32_0 = arith.constant 0 : i32
    %c0_i32_1 = arith.constant 0 : i32
    return %c0_i32, %c0_i32_0 : i32, i32
  }
  func.func @transform_4(%arg0: i32) -> (i32, i32) {
    %c0_i32 = arith.constant 0 : i32
    %c0_i32_0 = arith.constant 0 : i32
    %c0_i32_1 = arith.constant 0 : i32
    return %c0_i32, %c0_i32_0 : i32, i32
  }
  func.func @transform_5(%arg0: i32) -> (i32, i32) {
    %c0_i32 = arith.constant 0 : i32
    %c0_i32_0 = arith.constant 0 : i32
    %c0_i32_1 = arith.constant 0 : i32
    return %c0_i32, %c0_i32_0 : i32, i32
  }
  func.func @transform_6(%arg0: i32) -> (i32, i32) {
    %c0_i32 = arith.constant 0 : i32
    %c0_i32_0 = arith.constant 0 : i32
    %c0_i32_1 = arith.constant 0 : i32
    return %c0_i32, %c0_i32_0 : i32, i32
  }
  func.func @transform_7(%arg0: i32) -> (i32, i32) {
    %c0_i32 = arith.constant 0 : i32
    %c0_i32_0 = arith.constant 0 : i32
    %c0_i32_1 = arith.constant 0 : i32
    return %c0_i32, %c0_i32_0 : i32, i32
  }
  func.func @transform_8(%arg0: i32) -> (i32, i32) {
    %c0_i32 = arith.constant 0 : i32
    %c0_i32_0 = arith.constant 0 : i32
    %c0_i32_1 = arith.constant 0 : i32
    return %c0_i32, %c0_i32_0 : i32, i32
  }
  func.func @transform_9(%arg0: i32) -> (i32, i32) {
    %c0_i32 = arith.constant 0 : i32
    %c0_i32_0 = arith.constant 0 : i32
    %c0_i32_1 = arith.constant 0 : i32
    return %c0_i32, %c0_i32_0 : i32, i32
  }
  func.func @transform_10(%arg0: i32) -> (i32, i32) {
    %c0_i32 = arith.constant 0 : i32
    %c0_i32_0 = arith.constant 0 : i32
    return %arg0, %c0_i32 : i32, i32
  }
  func.func @transform_11(%arg0: i32) -> (i32, i32) {
    %c0_i32 = arith.constant 0 : i32
    %c0_i32_0 = arith.constant 0 : i32
    return %arg0, %c0_i32 : i32, i32
  }
}

</mosaic_0001>

<llo_original>
// kernel: tpu_custom_call.1
$region0: #{tpu_custom_call.1}
  #allocation0 [shape = 'u32[]', space=smem, size = 0x4, offset = 0x4, fixed_abs, tag = 'smem constant byte address 0x4 - core index']
  #allocation1 [shape = 'u32[144,128]{1,0:T(1,128)}', space=vmem, size = 0x12000, scoped, tag = 'internal scratch']
  %s0 = inlined_call_operand.hbm [shape: bf16[8,256], index: 0, kind: input, shape index: {}]
  %s1 = inlined_call_operand.hbm [shape: f32[8,64], index: 1, kind: input, shape index: {}]
  %s2 = inlined_call_operand.hbm [shape: bf16[256,128], index: 2, kind: input, shape index: {}]
  %s3 = inlined_call_operand.vmem [shape: f32[1,128], index: 3, kind: input, shape index: {}]
  %s4 = inlined_call_operand.hbm [shape: bf16[128,128], index: 4, kind: input, shape index: {}]
  %s5 = inlined_call_operand.vmem [shape: f32[1,128], index: 5, kind: input, shape index: {}]
  %s6 = inlined_call_operand.hbm [shape: bf16[64,128], index: 6, kind: input, shape index: {}]
  %s7 = inlined_call_operand.vmem [shape: f32[1,128], index: 7, kind: input, shape index: {}]
  %s8 = inlined_call_operand.hbm [shape: bf16[128,256], index: 8, kind: input, shape index: {}]
  %s9 = inlined_call_operand.vmem [shape: f32[1,256], index: 9, kind: input, shape index: {}]
  %s10 = inlined_call_operand.hbm [shape: f32[8,256], index: 10, kind: output, shape index: {0}]
  %s11 = inlined_call_operand.hbm [shape: f32[8,128], index: 11, kind: output, shape index: {1}]
  %12 = xla_tuple %s10, %s11
  %s13 = sld [smem:[#allocation0]]
  $region82: #{tpu_custom_call.1} parent=0
    _
  %s15 = ssub.s32 1, %s13
  %s16 = scalar_select 0, %s15, %s13
  $region1: #{tpu_custom_call.1} parent=0
    #allocation2 [shape = 'u8[4096]{0}', space=vmem, size = 0x1000, scoped, tag = 'input window, operand 0, single buffered']
    #allocation3 [shape = 's32[1]{0}', space=sflag, size = 0x4, scoped, tag = 'scoped memory for tpu_custom_call.1']
    #allocation4 [shape = 's32[1]{0}', space=sflag, size = 0x4, scoped, tag = 'scoped memory for tpu_custom_call.1']
    #allocation5 [shape = 'u8[4096]{0}', space=vmem, size = 0x1000, scoped, tag = 'input window, operand 1, single buffered']
    #allocation6 [shape = 's32[1]{0}', space=sflag, size = 0x4, scoped, tag = 'scoped memory for tpu_custom_call.1']
    #allocation7 [shape = 'u8[65536]{0}', space=vmem, size = 0x10000, scoped, tag = 'input window, operand 2, single buffered']
    #allocation8 [shape = 'u8[32768]{0}', space=vmem, size = 0x8000, scoped, tag = 'input window, operand 4, single buffered']
    #allocation9 [shape = 's32[1]{0}', space=sflag, size = 0x4, scoped, tag = 'scoped memory for tpu_custom_call.1']
    #allocation10 [shape = 'u8[16384]{0}', space=vmem, size = 0x4000, scoped, tag = 'input window, operand 6, single buffered']
    #allocation11 [shape = 'u8[65536]{0}', space=vmem, size = 0x10000, scoped, tag = 'input window, operand 8, single buffered']
    #allocation12 [shape = 's32[1]{0}', space=sflag, size = 0x4, scoped, tag = 'scoped memory for tpu_custom_call.1']
    #allocation13 [shape = 'u8[8192]{0}', space=vmem, size = 0x2000, scoped, tag = 'output window, operand 0, single buffered']
    #allocation14 [shape = 'u8[4096]{0}', space=vmem, size = 0x1000, scoped, tag = 'output window, operand 1, single buffered']
    #allocation15 [shape = 's32[1]{0}', space=sflag, size = 0x4, scoped, tag = 'scoped memory for tpu_custom_call.1']
    %17 = vsyncpa [#allocation3], 0
    %18 = vsyncpa [#allocation6], 0
    %19 = vsyncpa [#allocation9], 0
    %20 = vsyncpa [#allocation12], 0
    %21 = vsyncpa [#allocation4], 0
    %22 = vsyncpa [#allocation15], 0
    // Predicated region
    $region2: #{tpu_custom_call.1} parent=1 // pred_check
      _
    $region3: #{tpu_custom_call.1} parent=1 // pred_check_branch
      %24 = sbr.rel (0) target = $region5
    $region4: #{tpu_custom_call.1} parent=1 // pred_region
      %s26 = ssub.s32 128, 128
      %27 = vsyncadd [#allocation3], %s26
      %s29 = sshll.u32 [#allocation2], 4
      %s30 = int_to_ptr.vmem [resolvable:$true] %s29
      %32 = dma.hbm_to_vmem [thread:$0]  %s0, 128, %s30, [#allocation3]
    $region5: #{tpu_custom_call.1} parent=1 // pred_fallthru
      _
    // Predicated region
    $region6: #{tpu_custom_call.1} parent=1 // pred_check
      _
    $region7: #{tpu_custom_call.1} parent=1 // pred_check_branch
      %34 = sbr.rel (0) target = $region9
    $region8: #{tpu_custom_call.1} parent=1 // pred_region
      %s36 = ssub.s32 128, 128
      %37 = vsyncadd [#allocation6], %s36
      %s39 = sshll.u32 [#allocation5], 4
      %s40 = int_to_ptr.vmem [resolvable:$true] %s39
      %42 = dma.hbm_to_vmem [thread:$0]  %s1, 128, %s40, [#allocation6]
    $region9: #{tpu_custom_call.1} parent=1 // pred_fallthru
      _
    // Predicated region
    $region10: #{tpu_custom_call.1} parent=1 // pred_check
      _
    $region11: #{tpu_custom_call.1} parent=1 // pred_check_branch
      %44 = sbr.rel (0) target = $region13
    $region12: #{tpu_custom_call.1} parent=1 // pred_region
      %s46 = ssub.s32 2048, 2048
      %47 = vsyncadd [#allocation6], %s46
      %s48 = sshll.u32 [#allocation7], 4
      %s49 = int_to_ptr.vmem [resolvable:$true] %s48
      %54 = dma.hbm_to_vmem [thread:$0]  %s2, 2048, %s49, [#allocation6], 64, 64, 4
    $region13: #{tpu_custom_call.1} parent=1 // pred_fallthru
      _
    // Predicated region
    $region14: #{tpu_custom_call.1} parent=1 // pred_check
      _
    $region15: #{tpu_custom_call.1} parent=1 // pred_check_branch
      %56 = sbr.rel (0) target = $region17
    $region16: #{tpu_custom_call.1} parent=1 // pred_region
      _
    $region17: #{tpu_custom_call.1} parent=1 // pred_fallthru
      _
    // Predicated region
    $region18: #{tpu_custom_call.1} parent=1 // pred_check
      _
    $region19: #{tpu_custom_call.1} parent=1 // pred_check_branch
      %58 = sbr.rel (0) target = $region21
    $region20: #{tpu_custom_call.1} parent=1 // pred_region
      %s60 = ssub.s32 1024, 1024
      %61 = vsyncadd [#allocation9], %s60
      %s62 = sshll.u32 [#allocation8], 4
      %s63 = int_to_ptr.vmem [resolvable:$true] %s62
      %68 = dma.hbm_to_vmem [thread:$0]  %s4, 1024, %s63, [#allocation9], 64, 64, 4
    $region21: #{tpu_custom_call.1} parent=1 // pred_fallthru
      _
    // Predicated region
    $region22: #{tpu_custom_call.1} parent=1 // pred_check
      _
    $region23: #{tpu_custom_call.1} parent=1 // pred_check_branch
      %70 = sbr.rel (0) target = $region25
    $region24: #{tpu_custom_call.1} parent=1 // pred_region
      _
    $region25: #{tpu_custom_call.1} parent=1 // pred_fallthru
      _
    // Predicated region
    $region26: #{tpu_custom_call.1} parent=1 // pred_check
      _
    $region27: #{tpu_custom_call.1} parent=1 // pred_check_branch
      %72 = sbr.rel (0) target = $region29
    $region28: #{tpu_custom_call.1} parent=1 // pred_region
      %s74 = ssub.s32 512, 512
      %75 = vsyncadd [#allocation9], %s74
      %s76 = sshll.u32 [#allocation10], 4
      %s77 = int_to_ptr.vmem [resolvable:$true] %s76
      %82 = dma.hbm_to_vmem [thread:$0]  %s6, 512, %s77, [#allocation9], 64, 64, 4
    $region29: #{tpu_custom_call.1} parent=1 // pred_fallthru
      _
    // Predicated region
    $region30: #{tpu_custom_call.1} parent=1 // pred_check
      _
    $region31: #{tpu_custom_call.1} parent=1 // pred_check_branch
      %84 = sbr.rel (0) target = $region33
    $region32: #{tpu_custom_call.1} parent=1 // pred_region
      _
    $region33: #{tpu_custom_call.1} parent=1 // pred_fallthru
      _
    // Predicated region
    $region34: #{tpu_custom_call.1} parent=1 // pred_check
      _
    $region35: #{tpu_custom_call.1} parent=1 // pred_check_branch
      %86 = sbr.rel (0) target = $region37
    $region36: #{tpu_custom_call.1} parent=1 // pred_region
      %s88 = ssub.s32 2048, 2048
      %89 = vsyncadd [#allocation12], %s88
      %s90 = sshll.u32 [#allocation11], 4
      %s91 = int_to_ptr.vmem [resolvable:$true] %s90
      %96 = dma.hbm_to_vmem [thread:$0]  %s8, 2048, %s91, [#allocation12], 128, 128, 8
    $region37: #{tpu_custom_call.1} parent=1 // pred_fallthru
      _
    // Predicated region
    $region38: #{tpu_custom_call.1} parent=1 // pred_check
      _
    $region39: #{tpu_custom_call.1} parent=1 // pred_check_branch
      %98 = sbr.rel (0) target = $region41
    $region40: #{tpu_custom_call.1} parent=1 // pred_region
      _
    $region41: #{tpu_custom_call.1} parent=1 // pred_fallthru
      _
    // Predicated region
    $region42: #{tpu_custom_call.1} parent=1 // pred_check
      _
    $region43: #{tpu_custom_call.1} parent=1 // pred_check_branch
      %100 = sbr.rel (0) target = $region45
    $region44: #{tpu_custom_call.1} parent=1 // pred_region
      %101 = dma.done [#allocation3], 128
    $region45: #{tpu_custom_call.1} parent=1 // pred_fallthru
      _
    // Predicated region
    $region46: #{tpu_custom_call.1} parent=1 // pred_check
      _
    $region47: #{tpu_custom_call.1} parent=1 // pred_check_branch
      %103 = sbr.rel (0) target = $region49
    $region48: #{tpu_custom_call.1} parent=1 // pred_region
      %104 = dma.done [#allocation6], 128
    $region49: #{tpu_custom_call.1} parent=1 // pred_fallthru
      _
    // Predicated region
    $region50: #{tpu_custom_call.1} parent=1 // pred_check
      _
    $region51: #{tpu_custom_call.1} parent=1 // pred_check_branch
      %106 = sbr.rel (0) target = $region53
    $region52: #{tpu_custom_call.1} parent=1 // pred_region
      %107 = dma.done [#allocation6], 2048
    $region53: #{tpu_custom_call.1} parent=1 // pred_fallthru
      _
    // Predicated region
    $region54: #{tpu_custom_call.1} parent=1 // pred_check
      _
    $region55: #{tpu_custom_call.1} parent=1 // pred_check_branch
      %109 = sbr.rel (0) target = $region57
    $region56: #{tpu_custom_call.1} parent=1 // pred_region
      %110 = dma.done [#allocation9], 1024
    $region57: #{tpu_custom_call.1} parent=1 // pred_fallthru
      _
    // Predicated region
    $region58: #{tpu_custom_call.1} parent=1 // pred_check
      _
    $region59: #{tpu_custom_call.1} parent=1 // pred_check_branch
      %112 = sbr.rel (0) target = $region61
    $region60: #{tpu_custom_call.1} parent=1 // pred_region
      %113 = dma.done [#allocation9], 512
    $region61: #{tpu_custom_call.1} parent=1 // pred_fallthru
      _
    // Predicated region
    $region62: #{tpu_custom_call.1} parent=1 // pred_check
      _
    $region63: #{tpu_custom_call.1} parent=1 // pred_check_branch
      %115 = sbr.rel (0) target = $region65
    $region64: #{tpu_custom_call.1} parent=1 // pred_region
      %116 = dma.done [#allocation12], 2048
    $region65: #{tpu_custom_call.1} parent=1 // pred_fallthru
      _
    %v118 = vld [vmem:[#allocation2] sm:$0xff]
    %v119 = vld [vmem:[#allocation7] sm:$0xf]
    %v120 = vld [vmem:[#allocation7 + $0x4] sm:$0xf]
    %v121 = vld [vmem:[#allocation7 + $0x8] sm:$0xf]
    %v122 = vld [vmem:[#allocation7 + $0xc] sm:$0xf]
    %v123 = vld [vmem:[#allocation7 + $0x10] sm:$0xf]
    %v124 = vld [vmem:[#allocation7 + $0x14] sm:$0xf]
    %v125 = vld [vmem:[#allocation7 + $0x18] sm:$0xf]
    %v126 = vld [vmem:[#allocation7 + $0x1c] sm:$0xf]
    %v127 = vld [vmem:[#allocation7 + $0x20] sm:$0xf]
    %v128 = vld [vmem:[#allocation7 + $0x24] sm:$0xf]
    %v129 = vld [vmem:[#allocation7 + $0x28] sm:$0xf]
    %v130 = vld [vmem:[#allocation7 + $0x2c] sm:$0xf]
    %v131 = vld [vmem:[#allocation7 + $0x30] sm:$0xf]
    %v132 = vld [vmem:[#allocation7 + $0x34] sm:$0xf]
    %v133 = vld [vmem:[#allocation7 + $0x38] sm:$0xf]
    %v134 = vld [vmem:[#allocation7 + $0x3c] sm:$0xf]
    %v135 = vld [vmem:[#allocation7 + $0x40] sm:$0xf]
    %v136 = vld [vmem:[#allocation7 + $0x44] sm:$0xf]
    %v137 = vld [vmem:[#allocation7 + $0x48] sm:$0xf]
    %v138 = vld [vmem:[#allocation7 + $0x4c] sm:$0xf]
    %v139 = vld [vmem:[#allocation7 + $0x50] sm:$0xf]
    %v140 = vld [vmem:[#allocation7 + $0x54] sm:$0xf]
    %v141 = vld [vmem:[#allocation7 + $0x58] sm:$0xf]
    %v142 = vld [vmem:[#allocation7 + $0x5c] sm:$0xf]
    %v143 = vld [vmem:[#allocation7 + $0x60] sm:$0xf]
    %v144 = vld [vmem:[#allocation7 + $0x64] sm:$0xf]
    %v145 = vld [vmem:[#allocation7 + $0x68] sm:$0xf]
    %v146 = vld [vmem:[#allocation7 + $0x6c] sm:$0xf]
    %v147 = vld [vmem:[#allocation7 + $0x70] sm:$0xf]
    %v148 = vld [vmem:[#allocation7 + $0x74] sm:$0xf]
    %v149 = vld [vmem:[#allocation7 + $0x78] sm:$0xf]
    %v150 = vld [vmem:[#allocation7 + $0x7c] sm:$0xf]
    %v151 = vld [vmem:[%s3] sm:$0x1]
    %v153 = vlaneseq
    %v154 = vshrl.u32 %v153, 7
    %v155 = vsub.s32 0, %v154
    %v156 = vrot.slane %v151, %v155
    %v159 = vunpack.c.l.b16 %v118
    %v160 = vunpack.c.h.b16 %v118
    %v161 = vpack.c.b16 %v159, %v159
    %v162 = vpack.c.b16 %v160, %v160
    %v197 = vunpack.c.l.b16 %v119
    %v198 = vunpack.c.l.b16 %v120
    %v199 = vunpack.c.l.b16 %v121
    %v200 = vunpack.c.l.b16 %v122
    %v201 = vunpack.c.l.b16 %v123
    %v202 = vunpack.c.l.b16 %v124
    %v203 = vunpack.c.l.b16 %v125
    %v204 = vunpack.c.l.b16 %v126
    %v205 = vunpack.c.l.b16 %v127
    %v206 = vunpack.c.l.b16 %v128
    %v207 = vunpack.c.l.b16 %v129
    %v208 = vunpack.c.l.b16 %v130
    %v209 = vunpack.c.l.b16 %v131
    %v210 = vunpack.c.l.b16 %v132
    %v211 = vunpack.c.l.b16 %v133
    %v212 = vunpack.c.l.b16 %v134
    %v213 = vunpack.c.l.b16 %v135
    %v214 = vunpack.c.l.b16 %v136
    %v215 = vunpack.c.l.b16 %v137
    %v216 = vunpack.c.l.b16 %v138
    %v217 = vunpack.c.l.b16 %v139
    %v218 = vunpack.c.l.b16 %v140
    %v219 = vunpack.c.l.b16 %v141
    %v220 = vunpack.c.l.b16 %v142
    %v221 = vunpack.c.l.b16 %v143
    %v222 = vunpack.c.l.b16 %v144
    %v223 = vunpack.c.l.b16 %v145
    %v224 = vunpack.c.l.b16 %v146
    %v225 = vunpack.c.l.b16 %v147
    %v226 = vunpack.c.l.b16 %v148
    %v227 = vunpack.c.l.b16 %v149
    %v228 = vunpack.c.l.b16 %v150
    %v229 = vpack.c.b16 %v198, %v197
    %v230 = vpack.c.b16 %v200, %v199
    %v231 = vpack.c.b16 %v202, %v201
    %v232 = vpack.c.b16 %v204, %v203
    %v233 = vpack.c.b16 %v206, %v205
    %v234 = vpack.c.b16 %v208, %v207
    %v235 = vpack.c.b16 %v210, %v209
    %v236 = vpack.c.b16 %v212, %v211
    %v237 = vpack.c.b16 %v214, %v213
    %v238 = vpack.c.b16 %v216, %v215
    %v239 = vpack.c.b16 %v218, %v217
    %v240 = vpack.c.b16 %v220, %v219
    %v241 = vpack.c.b16 %v222, %v221
    %v242 = vpack.c.b16 %v224, %v223
    %v243 = vpack.c.b16 %v226, %v225
    %v244 = vpack.c.b16 %v228, %v227
    %261 = vmatprep.subr.bf16.mxu0 0
    %262 = vmatpush1.bf16.msra.mxu0 %v229
    %263 = vmatprep.subr.bf16.mxu0 0
    %264 = vmatpush1.bf16.msra.mxu0 %v230
    %265 = vmatprep.subr.bf16.mxu0 0
    %266 = vmatpush1.bf16.msra.mxu0 %v231
    %267 = vmatprep.subr.bf16.mxu0 0
    %268 = vmatpush1.bf16.msra.mxu0 %v232
    %269 = vmatprep.subr.bf16.mxu0 0
    %270 = vmatpush1.bf16.msra.mxu0 %v233
    %271 = vmatprep.subr.bf16.mxu0 0
    %272 = vmatpush1.bf16.msra.mxu0 %v234
    %273 = vmatprep.subr.bf16.mxu0 0
    %274 = vmatpush1.bf16.msra.mxu0 %v235
    %275 = vmatprep.subr.bf16.mxu0 0
    %276 = vmatpush1.bf16.msra.mxu0 %v236
    %277 = vmatprep.subr.bf16.mxu0 0
    %278 = vmatpush1.bf16.msra.mxu0 %v237
    %279 = vmatprep.subr.bf16.mxu0 0
    %280 = vmatpush1.bf16.msra.mxu0 %v238
    %281 = vmatprep.subr.bf16.mxu0 0
    %282 = vmatpush1.bf16.msra.mxu0 %v239
    %283 = vmatprep.subr.bf16.mxu0 0
    %284 = vmatpush1.bf16.msra.mxu0 %v240
    %285 = vmatprep.subr.bf16.mxu0 0
    %286 = vmatpush1.bf16.msra.mxu0 %v241
    %287 = vmatprep.subr.bf16.mxu0 0
    %288 = vmatpush1.bf16.msra.mxu0 %v242
    %289 = vmatprep.subr.bf16.mxu0 0
    %290 = vmatpush1.bf16.msra.mxu0 %v243
    %291 = vmatprep.subr.bf16.mxu0 0
    %292 = vmatpush1.bf16.msra.mxu0 %v244
    %293 = vmatprep.mubr.bf16.mxu0 %v162
    %294 = vmatmul.mubr.bf16.gmra.mrb[0].mxu0 %v161
    %v295 = vpop.f32.mrb[0].mxu0
    %v296 = vadd.f32 %v156, %v295
    %v297 = vpop.f32.mrb[0].mxu0
    %v298 = vpop.f32.mrb[0].mxu0
    %v299 = vpop.f32.mrb[0].mxu0
    %300 = vdwg.mxu0
    %v301 = vmax.f32 %v296, 0.0
    %v302 = vpack.c.bf16 %v301, %v301
    %v303 = vld [vmem:[#allocation8] sm:$0xf]
    %v304 = vld [vmem:[#allocation8 + $0x4] sm:$0xf]
    %v305 = vld [vmem:[#allocation8 + $0x8] sm:$0xf]
    %v306 = vld [vmem:[#allocation8 + $0xc] sm:$0xf]
    %v307 = vld [vmem:[#allocation8 + $0x10] sm:$0xf]
    %v308 = vld [vmem:[#allocation8 + $0x14] sm:$0xf]
    %v309 = vld [vmem:[#allocation8 + $0x18] sm:$0xf]
    %v310 = vld [vmem:[#allocation8 + $0x1c] sm:$0xf]
    %v311 = vld [vmem:[#allocation8 + $0x20] sm:$0xf]
    %v312 = vld [vmem:[#allocation8 + $0x24] sm:$0xf]
    %v313 = vld [vmem:[#allocation8 + $0x28] sm:$0xf]
    %v314 = vld [vmem:[#allocation8 + $0x2c] sm:$0xf]
    %v315 = vld [vmem:[#allocation8 + $0x30] sm:$0xf]
    %v316 = vld [vmem:[#allocation8 + $0x34] sm:$0xf]
    %v317 = vld [vmem:[#allocation8 + $0x38] sm:$0xf]
    %v318 = vld [vmem:[#allocation8 + $0x3c] sm:$0xf]
    %v319 = vld [vmem:[%s5] sm:$0x1]
    %v321 = vlaneseq
    %v322 = vshrl.u32 %v321, 7
    %v323 = vsub.s32 0, %v322
    %v324 = vrot.slane %v319, %v323
    %v342 = vunpack.c.l.b16 %v303
    %v343 = vunpack.c.l.b16 %v304
    %v344 = vunpack.c.l.b16 %v305
    %v345 = vunpack.c.l.b16 %v306
    %v346 = vunpack.c.l.b16 %v307
    %v347 = vunpack.c.l.b16 %v308
    %v348 = vunpack.c.l.b16 %v309
    %v349 = vunpack.c.l.b16 %v310
    %v350 = vunpack.c.l.b16 %v311
    %v351 = vunpack.c.l.b16 %v312
    %v352 = vunpack.c.l.b16 %v313
    %v353 = vunpack.c.l.b16 %v314
    %v354 = vunpack.c.l.b16 %v315
    %v355 = vunpack.c.l.b16 %v316
    %v356 = vunpack.c.l.b16 %v317
    %v357 = vunpack.c.l.b16 %v318
    %v358 = vpack.c.b16 %v343, %v342
    %v359 = vpack.c.b16 %v345, %v344
    %v360 = vpack.c.b16 %v347, %v346
    %v361 = vpack.c.b16 %v349, %v348
    %v362 = vpack.c.b16 %v351, %v350
    %v363 = vpack.c.b16 %v353, %v352
    %v364 = vpack.c.b16 %v355, %v354
    %v365 = vpack.c.b16 %v357, %v356
    %374 = vmatprep.subr.bf16.mxu0 0
    %375 = vmatpush1.bf16.msra.mxu0 %v358
    %376 = vmatprep.subr.bf16.mxu0 0
    %377 = vmatpush1.bf16.msra.mxu0 %v359
    %378 = vmatprep.subr.bf16.mxu0 0
    %379 = vmatpush1.bf16.msra.mxu0 %v360
    %380 = vmatprep.subr.bf16.mxu0 0
    %381 = vmatpush1.bf16.msra.mxu0 %v361
    %382 = vmatprep.subr.bf16.mxu0 0
    %383 = vmatpush1.bf16.msra.mxu0 %v362
    %384 = vmatprep.subr.bf16.mxu0 0
    %385 = vmatpush1.bf16.msra.mxu0 %v363
    %386 = vmatprep.subr.bf16.mxu0 0
    %387 = vmatpush1.bf16.msra.mxu0 %v364
    %388 = vmatprep.subr.bf16.mxu0 0
    %389 = vmatpush1.bf16.msra.mxu0 %v365
    %390 = vmatprep.subr.bf16.mxu0 0
    %391 = vmatpush1.bf16.msra.mxu0 0
    %392 = vmatprep.subr.bf16.mxu0 0
    %393 = vmatpush1.bf16.msra.mxu0 0
    %394 = vmatprep.subr.bf16.mxu0 0
    %395 = vmatpush1.bf16.msra.mxu0 0
    %396 = vmatprep.subr.bf16.mxu0 0
    %397 = vmatpush1.bf16.msra.mxu0 0
    %398 = vmatprep.subr.bf16.mxu0 0
    %399 = vmatpush1.bf16.msra.mxu0 0
    %400 = vmatprep.subr.bf16.mxu0 0
    %401 = vmatpush1.bf16.msra.mxu0 0
    %402 = vmatprep.subr.bf16.mxu0 0
    %403 = vmatpush1.bf16.msra.mxu0 0
    %404 = vmatprep.subr.bf16.mxu0 0
    %405 = vmatpush1.bf16.msra.mxu0 0
    %406 = vmatprep.mubr.bf16.mxu0 0
    %407 = vmatmul.mubr.bf16.gmra.mrb[0].mxu0 %v302
    %v408 = vpop.f32.mrb[0].mxu0
    %v409 = vadd.f32 %v324, %v408
    %v410 = vpop.f32.mrb[0].mxu0
    %v411 = vpop.f32.mrb[0].mxu0
    %v412 = vpop.f32.mrb[0].mxu0
    %413 = vdwg.mxu0
    %v414 = vld [vmem:[#allocation5] sm:$0xff]
    %v415 = vmul.f32 %v409, 0.5
    %v416 = vmul.f32 %v415, 1.442695
    %v417 = vpow.pop %v416
    %419 = vrot.lane.b32.xlu0 %v417, 64
    %v420 = vpop.permute.xlu0 %419
    %v422 = vmul.f32 %v414, %v420
    %v423 = vadd.f32 %v409, %v422
    %v424 = vpack.c.bf16 %v423, %v423
    %v425 = vld [vmem:[#allocation10] sm:$0xf]
    %v426 = vld [vmem:[#allocation10 + $0x4] sm:$0xf]
    %v427 = vld [vmem:[#allocation10 + $0x8] sm:$0xf]
    %v428 = vld [vmem:[#allocation10 + $0xc] sm:$0xf]
    %v429 = vld [vmem:[#allocation10 + $0x10] sm:$0xf]
    %v430 = vld [vmem:[#allocation10 + $0x14] sm:$0xf]
    %v431 = vld [vmem:[#allocation10 + $0x18] sm:$0xf]
    %v432 = vld [vmem:[#allocation10 + $0x1c] sm:$0xf]
    %v433 = vld [vmem:[%s7] sm:$0x1]
    %v435 = vlaneseq
    %v436 = vshrl.u32 %v435, 7
    %v437 = vsub.s32 0, %v436
    %v438 = vrot.slane %v433, %v437
    %v448 = vunpack.c.l.b16 %v425
    %v449 = vunpack.c.l.b16 %v426
    %v450 = vunpack.c.l.b16 %v427
    %v451 = vunpack.c.l.b16 %v428
    %v452 = vunpack.c.l.b16 %v429
    %v453 = vunpack.c.l.b16 %v430
    %v454 = vunpack.c.l.b16 %v431
    %v455 = vunpack.c.l.b16 %v432
    %v456 = vpack.c.b16 %v449, %v448
    %v457 = vpack.c.b16 %v451, %v450
    %v458 = vpack.c.b16 %v453, %v452
    %v459 = vpack.c.b16 %v455, %v454
    %vm464 = vcmask 523264
    %v466 = vsel %vm464, %v424, 0
    %468 = vmatprep.subr.bf16.mxu0 0
    %469 = vmatpush1.bf16.msra.mxu0 %v456
    %470 = vmatprep.subr.bf16.mxu0 0
    %471 = vmatpush1.bf16.msra.mxu0 %v457
    %472 = vmatprep.subr.bf16.mxu0 0
    %473 = vmatpush1.bf16.msra.mxu0 %v458
    %474 = vmatprep.subr.bf16.mxu0 0
    %475 = vmatpush1.bf16.msra.mxu0 %v459
    %476 = vmatprep.subr.bf16.mxu0 0
    %477 = vmatpush1.bf16.msra.mxu0 0
    %478 = vmatprep.subr.bf16.mxu0 0
    %479 = vmatpush1.bf16.msra.mxu0 0
    %480 = vmatprep.subr.bf16.mxu0 0
    %481 = vmatpush1.bf16.msra.mxu0 0
    %482 = vmatprep.subr.bf16.mxu0 0
    %483 = vmatpush1.bf16.msra.mxu0 0
    %484 = vmatprep.subr.bf16.mxu0 0
    %485 = vmatpush1.bf16.msra.mxu0 0
    %486 = vmatprep.subr.bf16.mxu0 0
    %487 = vmatpush1.bf16.msra.mxu0 0
    %488 = vmatprep.subr.bf16.mxu0 0
    %489 = vmatpush1.bf16.msra.mxu0 0
    %490 = vmatprep.subr.bf16.mxu0 0
    %491 = vmatpush1.bf16.msra.mxu0 0
    %492 = vmatprep.subr.bf16.mxu0 0
    %493 = vmatpush1.bf16.msra.mxu0 0
    %494 = vmatprep.subr.bf16.mxu0 0
    %495 = vmatpush1.bf16.msra.mxu0 0
    %496 = vmatprep.subr.bf16.mxu0 0
    %497 = vmatpush1.bf16.msra.mxu0 0
    %498 = vmatprep.subr.bf16.mxu0 0
    %499 = vmatpush1.bf16.msra.mxu0 0
    %500 = vmatprep.mubr.bf16.mxu0 0
    %501 = vmatmul.mubr.bf16.gmra.mrb[0].mxu0 %v466
    %v502 = vpop.f32.mrb[0].mxu0
    %v503 = vadd.f32 %v438, %v502
    %v504 = vpop.f32.mrb[0].mxu0
    %v505 = vpop.f32.mrb[0].mxu0
    %v506 = vpop.f32.mrb[0].mxu0
    %507 = vdwg.mxu0
    %v508 = vmax.f32 %v503, 0.0
    %v509 = vpack.c.bf16 %v508, %v508
    %v510 = vld [vmem:[#allocation11] sm:$0xff]
    %v511 = vld [vmem:[#allocation11 + $0x8] sm:$0xff]
    %v512 = vld [vmem:[#allocation11 + $0x10] sm:$0xff]
    %v513 = vld [vmem:[#allocation11 + $0x18] sm:$0xff]
    %v514 = vld [vmem:[#allocation11 + $0x20] sm:$0xff]
    %v515 = vld [vmem:[#allocation11 + $0x28] sm:$0xff]
    %v516 = vld [vmem:[#allocation11 + $0x30] sm:$0xff]
    %v517 = vld [vmem:[#allocation11 + $0x38] sm:$0xff]
    %v518 = vld [vmem:[#allocation11 + $0x40] sm:$0xff]
    %v519 = vld [vmem:[#allocation11 + $0x48] sm:$0xff]
    %v520 = vld [vmem:[#allocation11 + $0x50] sm:$0xff]
    %v521 = vld [vmem:[#allocation11 + $0x58] sm:$0xff]
    %v522 = vld [vmem:[#allocation11 + $0x60] sm:$0xff]
    %v523 = vld [vmem:[#allocation11 + $0x68] sm:$0xff]
    %v524 = vld [vmem:[#allocation11 + $0x70] sm:$0xff]
    %v525 = vld [vmem:[#allocation11 + $0x78] sm:$0xff]
    %v526 = vld [vmem:[%s9] sm:$0x3]
    %v528 = vlaneseq
    %v529 = vshrl.u32 %v528, 7
    %v530 = vsub.s32 0, %v529
    %v531 = vrot.slane %v526, %v530
    %v532 = vlaneseq
    %v533 = vshrl.u32 %v532, 7
    %v534 = vsub.s32 1, %v533
    %v535 = vrot.slane %v526, %v534
    %v554 = vunpack.c.l.b16 %v510
    %v555 = vunpack.c.h.b16 %v510
    %v556 = vunpack.c.l.b16 %v511
    %v557 = vunpack.c.h.b16 %v511
    %v558 = vunpack.c.l.b16 %v512
    %v559 = vunpack.c.h.b16 %v512
    %v560 = vunpack.c.l.b16 %v513
    %v561 = vunpack.c.h.b16 %v513
    %v562 = vunpack.c.l.b16 %v514
    %v563 = vunpack.c.h.b16 %v514
    %v564 = vunpack.c.l.b16 %v515
    %v565 = vunpack.c.h.b16 %v515
    %v566 = vunpack.c.l.b16 %v516
    %v567 = vunpack.c.h.b16 %v516
    %v568 = vunpack.c.l.b16 %v517
    %v569 = vunpack.c.h.b16 %v517
    %v570 = vunpack.c.l.b16 %v518
    %v571 = vunpack.c.h.b16 %v518
    %v572 = vunpack.c.l.b16 %v519
    %v573 = vunpack.c.h.b16 %v519
    %v574 = vunpack.c.l.b16 %v520
    %v575 = vunpack.c.h.b16 %v520
    %v576 = vunpack.c.l.b16 %v521
    %v577 = vunpack.c.h.b16 %v521
    %v578 = vunpack.c.l.b16 %v522
    %v579 = vunpack.c.h.b16 %v522
    %v580 = vunpack.c.l.b16 %v523
    %v581 = vunpack.c.h.b16 %v523
    %v582 = vunpack.c.l.b16 %v524
    %v583 = vunpack.c.h.b16 %v524
    %v584 = vunpack.c.l.b16 %v525
    %v585 = vunpack.c.h.b16 %v525
    %v586 = vpack.c.b16 %v556, %v554
    %v587 = vpack.c.b16 %v557, %v555
    %v588 = vpack.c.b16 %v560, %v558
    %v589 = vpack.c.b16 %v561, %v559
    %v590 = vpack.c.b16 %v564, %v562
    %v591 = vpack.c.b16 %v565, %v563
    %v592 = vpack.c.b16 %v568, %v566
    %v593 = vpack.c.b16 %v569, %v567
    %v594 = vpack.c.b16 %v572, %v570
    %v595 = vpack.c.b16 %v573, %v571
    %v596 = vpack.c.b16 %v576, %v574
    %v597 = vpack.c.b16 %v577, %v575
    %v598 = vpack.c.b16 %v580, %v578
    %v599 = vpack.c.b16 %v581, %v579
    %v600 = vpack.c.b16 %v584, %v582
    %v601 = vpack.c.b16 %v585, %v583
    %618 = vmatprep.subr.bf16.mxu0 %v587
    %619 = vmatpush1.bf16.msra.mxu0 %v586
    %620 = vmatprep.subr.bf16.mxu0 %v589
    %621 = vmatpush1.bf16.msra.mxu0 %v588
    %622 = vmatprep.subr.bf16.mxu0 %v591
    %623 = vmatpush1.bf16.msra.mxu0 %v590
    %624 = vmatprep.subr.bf16.mxu0 %v593
    %625 = vmatpush1.bf16.msra.mxu0 %v592
    %626 = vmatprep.subr.bf16.mxu0 %v595
    %627 = vmatpush1.bf16.msra.mxu0 %v594
    %628 = vmatprep.subr.bf16.mxu0 %v597
    %629 = vmatpush1.bf16.msra.mxu0 %v596
    %630 = vmatprep.subr.bf16.mxu0 %v599
    %631 = vmatpush1.bf16.msra.mxu0 %v598
    %632 = vmatprep.subr.bf16.mxu0 %v601
    %633 = vmatpush1.bf16.msra.mxu0 %v600
    %634 = vmatprep.subr.bf16.mxu0 0
    %635 = vmatpush1.bf16.msra.mxu0 0
    %636 = vmatprep.subr.bf16.mxu0 0
    %637 = vmatpush1.bf16.msra.mxu0 0
    %638 = vmatprep.subr.bf16.mxu0 0
    %639 = vmatpush1.bf16.msra.mxu0 0
    %640 = vmatprep.subr.bf16.mxu0 0
    %641 = vmatpush1.bf16.msra.mxu0 0
    %642 = vmatprep.subr.bf16.mxu0 0
    %643 = vmatpush1.bf16.msra.mxu0 0
    %644 = vmatprep.subr.bf16.mxu0 0
    %645 = vmatpush1.bf16.msra.mxu0 0
    %646 = vmatprep.subr.bf16.mxu0 0
    %647 = vmatpush1.bf16.msra.mxu0 0
    %648 = vmatprep.subr.bf16.mxu0 0
    %649 = vmatpush1.bf16.msra.mxu0 0
    %650 = vmatprep.mubr.bf16.mxu0 0
    %651 = vmatmul.mubr.bf16.gmra.mrb[0].mxu0 %v509
    %v652 = vpop.f32.mrb[0].mxu0
    %v653 = vadd.f32 %v531, %v652
    %v654 = vpop.f32.mrb[0].mxu0
    %v655 = vadd.f32 %v535, %v654
    %v656 = vpop.f32.mrb[0].mxu0
    %v657 = vpop.f32.mrb[0].mxu0
    %658 = vdwg.mxu0
    %659 = vst [vmem:[#allocation13] sm:$0xff] %v653
    %660 = vst [vmem:[#allocation13 + $0x8] sm:$0xff] %v655
    %661 = vst [vmem:[#allocation14] sm:$0xff] %v409
    // Predicated region
    $region66: #{tpu_custom_call.1} parent=1 // pred_check
      _
    $region67: #{tpu_custom_call.1} parent=1 // pred_check_branch
      %663 = sbr.rel (0) target = $region69
    $region68: #{tpu_custom_call.1} parent=1 // pred_region
      %s665 = ssub.s32 256, 256
      %666 = vsyncadd [#allocation4], %s665
      %s668 = sshll.u32 [#allocation13], 4
      %s669 = int_to_ptr.vmem [resolvable:$true] %s668
      %671 = dma.vmem_to_hbm [thread:$0]  %s669, 256, %s10, [#allocation4]
    $region69: #{tpu_custom_call.1} parent=1 // pred_fallthru
      _
    // Predicated region
    $region70: #{tpu_custom_call.1} parent=1 // pred_check
      _
    $region71: #{tpu_custom_call.1} parent=1 // pred_check_branch
      %673 = sbr.rel (0) target = $region73
    $region72: #{tpu_custom_call.1} parent=1 // pred_region
      %s675 = ssub.s32 128, 128
      %676 = vsyncadd [#allocation15], %s675
      %s678 = sshll.u32 [#allocation14], 4
      %s679 = int_to_ptr.vmem [resolvable:$true] %s678
      %681 = dma.vmem_to_hbm [thread:$0]  %s679, 128, %s11, [#allocation15]
    $region73: #{tpu_custom_call.1} parent=1 // pred_fallthru
      _
    // Predicated region
    $region74: #{tpu_custom_call.1} parent=1 // pred_check
      _
    $region75: #{tpu_custom_call.1} parent=1 // pred_check_branch
      %683 = sbr.rel (0) target = $region77
    $region76: #{tpu_custom_call.1} parent=1 // pred_region
      %684 = dma.done [#allocation4], 256
    $region77: #{tpu_custom_call.1} parent=1 // pred_fallthru
      _
    // Predicated region
    $region78: #{tpu_custom_call.1} parent=1 // pred_check
      _
    $region79: #{tpu_custom_call.1} parent=1 // pred_check_branch
      %686 = sbr.rel (0) target = $region81
    $region80: #{tpu_custom_call.1} parent=1 // pred_region
      %687 = dma.done [#allocation15], 128
    $region81: #{tpu_custom_call.1} parent=1 // pred_fallthru
      _
    %688 = vsyncpa [#allocation3], 1
    %689 = vsyncpa [#allocation6], 1
    %690 = vsyncpa [#allocation9], 1
    %691 = vsyncpa [#allocation12], 1
    %692 = vsyncpa [#allocation4], 1
    %693 = vsyncpa [#allocation15], 1

</llo_original>
